<compile_context>
chip_gen: v6e
topology: v6e:2x2x1
jax: 0.10.0
libtpu: 0.0.40
codegen_flags: <defaults>
</compile_context>

<pallas_src>
import functools

import jax
import jax.numpy as jnp
from jax.experimental import pallas as pl
from jax.experimental.pallas import tpu as pltpu


def _round_up(x, m):
    return ((x + m - 1) // m) * m


def _tpu_generation():
    """Best-effort TPU generation from device_kind; 0 if unknown."""
    try:
        kind = jax.devices()[0].device_kind.lower()
    except Exception:  # pragma: no cover - defensive
        return 0
    for g in (7, 6, 5, 4, 3, 2):
        if f"v{g}" in kind:
            return g
    return 0


def _choose_tile(batch, block_b, num_cores):
    """Pick the batch-tile size.

    Goals: (a) tiles big enough to amortize the ~0.35us/grid-step overhead,
    (b) at least `num_cores` grid steps so the 'parallel' batch axis shards
    across TensorCores on v7x, (c) minimal zero-padding waste.
    """
    if batch <= 256:
        per_core = -(-batch // num_cores) if num_cores > 1 else batch
        return _round_up(max(per_core, 8), 8)
    # Largest tile that still yields >= num_cores steps, capped by block_b.
    cap = max(256, min(block_b, _round_up(pl.cdiv(batch, num_cores), 256)))
    # One grid step costs ~0.35us ~= a few hundred rows of compute at this
    # layer size; trade that against padded (wasted) rows.
    step_overhead_rows = 704
    best_tb, best_cost = 256, None
    tb = 256
    while tb <= cap:
        padded = _round_up(batch, tb)
        cost = (padded // tb) * step_overhead_rows + padded
        if best_cost is None or cost <= best_cost:  # ties -> larger tile
            best_tb, best_cost = tb, cost
        tb += 256
    return best_tb


def _value_net_kernel(x_ref, w1_ref, b1_ref, w2_ref, b2_ref, w3_ref, b3_ref,
                      v_ref, *, bf16_act, mxu_head):
    # fc1 : (TB, D) @ (D, 256) on the MXU, bf16 operands, f32 accumulation.
    x = x_ref[...].astype(jnp.bfloat16)
    h1 = jnp.dot(x, w1_ref[...], preferred_element_type=jnp.float32)
    if bf16_act:
        # v6e/v7x: bias + ReLU on packed bf16 vregs (bf16 VALU).
        h1 = jnp.maximum(h1.astype(jnp.bfloat16) + b1_ref[...], 0)
    else:
        # v5e: no bf16 VALU -> keep activations in f32, cast only for the MXU.
        h1 = jnp.maximum(h1 + b1_ref[...], 0.0).astype(jnp.bfloat16)

    # fc2 : (TB, 256) @ (256, 256) on the MXU.
    h2 = jnp.dot(h1, w2_ref[...], preferred_element_type=jnp.float32)
    if bf16_act:
        h2 = jnp.maximum(h2.astype(jnp.bfloat16) + b2_ref[...], 0)
    else:
        h2 = jnp.maximum(h2 + b2_ref[...], 0.0)

    # fc3 (value head, N=1).
    if mxu_head:
        # v6e/v7x: MXU has slack; w3 is a (256, 128) bf16 block with the real
        # weights in column 0 and zeros elsewhere -> keep lane 0.
        h2b = h2 if h2.dtype == jnp.bfloat16 else h2.astype(jnp.bfloat16)
        v128 = jnp.dot(h2b, w3_ref[...], preferred_element_type=jnp.float32)
        v = v128[:, 0:1]
    else:
        # v5e: VPU multiply + XLU lane reduction keeps the binding MXU free.
        h2f = h2.astype(jnp.float32)
        v = jnp.sum(h2f * w3_ref[...], axis=-1, keepdims=True)
    v_ref[...] = v + b3_ref[...]


def value_network_forward(state, params, *, block_b=2048):
    """state: (B, input_dims) float32 -> V: (B, 1) float32."""
    w1, b1, w2, b2, w3, b3 = params  # canonical f32 params, weights (in, out)
    B, D = state.shape
    fc1_dims = w1.shape[1]
    fc2_dims = w2.shape[1]

    gen = _tpu_generation()
    bf16_act = gen >= 6          # bf16 VALU exists on v6e/v7x
    mxu_head = gen >= 6          # MXU has slack on v6e/v7x; keep VPU head on v5e
    num_cores = 2 if gen >= 7 else 1

    # Kernel-layout operands (weights stay VMEM-resident across grid steps).
    w1k = w1.astype(jnp.bfloat16)
    w2k = w2.astype(jnp.bfloat16)
    bias_dt = jnp.bfloat16 if bf16_act else jnp.float32
    b1k = b1.reshape(1, fc1_dims).astype(bias_dt)
    b2k = b2.reshape(1, fc2_dims).astype(bias_dt)
    if mxu_head:
        w3k = jnp.pad(w3, ((0, 0), (0, 128 - w3.shape[1]))).astype(jnp.bfloat16)
    else:
        w3k = w3.reshape(1, fc2_dims).astype(jnp.float32)
    b3k = b3.reshape(1, 1).astype(jnp.float32)

    # Batch tiling (large tiles; >=2 steps on v7x; minimal padding waste).
    block_b = max(8, min(int(block_b), 8192))
    tb = _choose_tile(B, block_b, num_cores)
    Bp = _round_up(B, tb)
    if Bp != B:
        state = jnp.pad(state, ((0, Bp - B), (0, 0)))
    grid = (Bp // tb,)

    def const_spec(shape):
        # Same block every grid step -> fetched once, stays VMEM-resident.
        return pl.BlockSpec(shape, lambda i: (0, 0))

    def nbytes(a):
        return a.size * a.dtype.itemsize

    # VMEM budget: double-buffered state/V tiles, (double-buffered) resident
    # weights, and compiler scratch for h1/h2 (f32 accumulator + bf16 copy)
    # plus the (tb, 128) head result.  1.5x margin + 8 MiB headroom, clamped
    # to [32, 64] MiB so it is valid on every generation (v7x has 64 MiB
    # physical VMEM per TensorCore).
    weight_bytes = sum(nbytes(a) for a in (w1k, b1k, w2k, b2k, w3k, b3k))
    act_bytes = tb * fc1_dims * 6 + tb * fc2_dims * 6 + tb * 128 * 4
    io_bytes = 2 * tb * D * 4 + 2 * tb * 4
    vmem_limit = int(1.5 * (2 * weight_bytes + act_bytes + io_bytes)) + (8 << 20)
    vmem_limit = max(32 << 20, min(vmem_limit, 64 << 20))

    head_cols = 128 if mxu_head else 1
    cost = pl.CostEstimate(
        flops=2 * Bp * (D * fc1_dims + fc1_dims * fc2_dims + fc2_dims * head_cols),
        transcendentals=0,
        bytes_accessed=Bp * D * 4 + weight_bytes + Bp * 4,
    )

    kernel = functools.partial(_value_net_kernel,
                               bf16_act=bf16_act, mxu_head=mxu_head)

    v = pl.pallas_call(
        kernel,
        out_shape=jax.ShapeDtypeStruct((Bp, 1), jnp.float32),
        grid_spec=pltpu.PrefetchScalarGridSpec(
            num_scalar_prefetch=0,
            grid=grid,
            in_specs=[
                pl.BlockSpec((tb, D), lambda i: (i, 0)),   # state tile (pipelined)
                const_spec(w1k.shape),                     # w1 (bf16, resident)
                const_spec(b1k.shape),                     # b1
                const_spec(w2k.shape),                     # w2 (bf16, resident)
                const_spec(b2k.shape),                     # b2
                const_spec(w3k.shape),                     # w3 (head layout)
                const_spec(b3k.shape),                     # b3
            ],
            out_specs=pl.BlockSpec((tb, 1), lambda i: (i, 0)),
        ),
        compiler_params=pltpu.CompilerParams(
            dimension_semantics=("parallel",),   # shards batch over v7x's 2 TCs
            vmem_limit_bytes=vmem_limit,
        ),
        cost_estimate=cost,
    )(state, w1k, b1k, w2k, b2k, w3k, b3k)
    return v[:B]


def init_params(key, input_dims, fc1_dims=256, fc2_dims=256):
    """f32 params mimicking nn.Linear's U(-1/sqrt(fan_in), 1/sqrt(fan_in)).

    Weights are stored (in_features, out_features) = PyTorch weight transposed.
    """
    k1, k2, k3, k4, k5, k6 = jax.random.split(key, 6)

    def u(k, shape, fan_in):
        bound = 1.0 / jnp.sqrt(jnp.float32(fan_in))
        return jax.random.uniform(k, shape, jnp.float32, -bound, bound)

    w1 = u(k1, (input_dims, fc1_dims), input_dims)
    b1 = u(k2, (fc1_dims,), input_dims)
    w2 = u(k3, (fc1_dims, fc2_dims), fc1_dims)
    b2 = u(k4, (fc2_dims,), fc1_dims)
    w3 = u(k5, (fc2_dims, 1), fc2_dims)
    b3 = u(k6, (1,), fc2_dims)
    return (w1, b1, w2, b2, w3, b3)


def reference_forward(state, params):
    """Full-f32 reference (matches the PyTorch module's math)."""
    w1, b1, w2, b2, w3, b3 = params
    h1 = jnp.maximum(state @ w1 + b1, 0.0)
    h2 = jnp.maximum(h1 @ w2 + b2, 0.0)
    return h2 @ w3 + b3


if __name__ == "__main__":
    key = jax.random.PRNGKey(0)
    pkey, xkey1, xkey2 = jax.random.split(key, 3)

    input_dims = 16
    params = init_params(pkey, input_dims)

    # Case 1: small batch, single tile.
    state_small = jax.random.normal(xkey1, (8, input_dims), jnp.float32)
    fwd = jax.jit(functools.partial(value_network_forward, block_b=2048))
    v_small = jax.block_until_ready(fwd(state_small, params))
    ref_small = reference_forward(state_small, params)
    assert v_small.shape == (8, 1)
    assert jnp.allclose(v_small, ref_small, atol=5e-2, rtol=5e-2), (
        "max abs err (small): "
        f"{float(jnp.max(jnp.abs(v_small - ref_small)))}")

    # Case 2: ragged batch with a small tile -> multi-step grid (exercises the
    # pipelined state stream, resident weights and the padding slice).
    state_big = jax.random.normal(xkey2, (600, input_dims), jnp.float32)
    fwd_tiled = jax.jit(functools.partial(value_network_forward, block_b=256))
    v_big = jax.block_until_ready(fwd_tiled(state_big, params))
    ref_big = reference_forward(state_big, params)
    assert v_big.shape == (600, 1)
    assert jnp.allclose(v_big, ref_big, atol=5e-2, rtol=5e-2), (
        "max abs err (big): "
        f"{float(jnp.max(jnp.abs(v_big - ref_big)))}")

    print("KERNEL_OK")
</pallas_src>

<mosaic_0001>
module attributes {stable_mosaic.version = 11 : i64} {
  func.func @_value_net_kernel(%arg0: i32, %arg1: memref<8x16xf32, #tpu.memory_space<vmem>>, %arg2: memref<16x256xbf16, #tpu.memory_space<vmem>>, %arg3: memref<1x256xf32, #tpu.memory_space<vmem>>, %arg4: memref<256x256xbf16, #tpu.memory_space<vmem>>, %arg5: memref<1x256xf32, #tpu.memory_space<vmem>>, %arg6: memref<1x256xf32, #tpu.memory_space<vmem>>, %arg7: memref<1x1xf32, #tpu.memory_space<vmem>>, %arg8: memref<8x1xf32, #tpu.memory_space<vmem>>) attributes {dimension_semantics = [#tpu.dimension_semantics<parallel>], iteration_bounds = array<i64: 1>, scalar_prefetch = 0 : i64, scratch_operands = 0 : i64, tpu.core_type = #tpu.core_type<tc>, window_params = [{transform_indices = @transform_0, window_bounds = array<i64: 8, 16>}, {pipeline_mode = #tpu.pipeline_mode<synchronous>, transform_indices = @transform_1, window_bounds = array<i64: 16, 256>}, {pipeline_mode = #tpu.pipeline_mode<synchronous>, transform_indices = @transform_2, window_bounds = array<i64: 1, 256>}, {pipeline_mode = #tpu.pipeline_mode<synchronous>, transform_indices = @transform_3, window_bounds = array<i64: 256, 256>}, {pipeline_mode = #tpu.pipeline_mode<synchronous>, transform_indices = @transform_4, window_bounds = array<i64: 1, 256>}, {pipeline_mode = #tpu.pipeline_mode<synchronous>, transform_indices = @transform_5, window_bounds = array<i64: 1, 256>}, {pipeline_mode = #tpu.pipeline_mode<synchronous>, transform_indices = @transform_6, window_bounds = array<i64: 1, 1>}, {transform_indices = @transform_7, window_bounds = array<i64: 8, 1>}]} {
    %c0 = arith.constant 0 : index
    %c0_0 = arith.constant 0 : index
    %0 = vector.load %arg1[%c0, %c0_0] : memref<8x16xf32, #tpu.memory_space<vmem>>, vector<8x16xf32>
    %1 = arith.truncf %0 : vector<8x16xf32> to vector<8x16xbf16>
    %c0_1 = arith.constant 0 : index
    %c0_2 = arith.constant 0 : index
    %2 = vector.load %arg2[%c0_1, %c0_2] : memref<16x256xbf16, #tpu.memory_space<vmem>>, vector<16x256xbf16>
    %cst = arith.constant dense<0.000000e+00> : vector<8x256xf32>
    %3 = tpu.matmul %1, %2, %cst {dimension_numbers = #tpu.dot_dimension_numbers<[1], [0], [0], [1], [0, 0, 1, 1], [], []>} : vector<8x16xbf16>, vector<16x256xbf16>, vector<8x256xf32> -> vector<8x256xf32>
    %c0_3 = arith.constant 0 : index
    %c0_4 = arith.constant 0 : index
    %4 = vector.load %arg3[%c0_3, %c0_4] : memref<1x256xf32, #tpu.memory_space<vmem>>, vector<1x256xf32>
    %5 = vector.broadcast %4 : vector<1x256xf32> to vector<8x256xf32>
    %6 = arith.addf %3, %5 : vector<8x256xf32>
    %cst_5 = arith.constant 0.000000e+00 : f32
    %7 = vector.broadcast %cst_5 : f32 to vector<8x256xf32>
    %8 = arith.maximumf %6, %7 : vector<8x256xf32>
    %9 = arith.truncf %8 : vector<8x256xf32> to vector<8x256xbf16>
    %c0_6 = arith.constant 0 : index
    %c0_7 = arith.constant 0 : index
    %10 = vector.load %arg4[%c0_6, %c0_7] : memref<256x256xbf16, #tpu.memory_space<vmem>>, vector<256x256xbf16>
    %cst_8 = arith.constant dense<0.000000e+00> : vector<8x256xf32>
    %11 = tpu.matmul %9, %10, %cst_8 {dimension_numbers = #tpu.dot_dimension_numbers<[1], [0], [0], [1], [0, 0, 1, 1], [], []>} : vector<8x256xbf16>, vector<256x256xbf16>, vector<8x256xf32> -> vector<8x256xf32>
    %c0_9 = arith.constant 0 : index
    %c0_10 = arith.constant 0 : index
    %12 = vector.load %arg5[%c0_9, %c0_10] : memref<1x256xf32, #tpu.memory_space<vmem>>, vector<1x256xf32>
    %13 = vector.broadcast %12 : vector<1x256xf32> to vector<8x256xf32>
    %14 = arith.addf %11, %13 : vector<8x256xf32>
    %cst_11 = arith.constant 0.000000e+00 : f32
    %15 = vector.broadcast %cst_11 : f32 to vector<8x256xf32>
    %16 = arith.maximumf %14, %15 : vector<8x256xf32>
    %c0_12 = arith.constant 0 : index
    %c0_13 = arith.constant 0 : index
    %17 = vector.load %arg6[%c0_12, %c0_13] : memref<1x256xf32, #tpu.memory_space<vmem>>, vector<1x256xf32>
    %18 = vector.broadcast %17 : vector<1x256xf32> to vector<8x256xf32>
    %19 = arith.mulf %16, %18 : vector<8x256xf32>
    %cst_14 = arith.constant dense<0.000000e+00> : vector<8xf32>
    %20 = vector.multi_reduction <add>, %19, %cst_14 [1] : vector<8x256xf32> to vector<8xf32>
    %21 = vector.shape_cast %20 : vector<8xf32> to vector<8x1xf32>
    %c0_15 = arith.constant 0 : index
    %c0_16 = arith.constant 0 : index
    %22 = vector.load %arg7[%c0_15, %c0_16] : memref<1x1xf32, #tpu.memory_space<vmem>>, vector<1x1xf32>
    %23 = vector.broadcast %22 : vector<1x1xf32> to vector<8x1xf32>
    %24 = arith.addf %21, %23 : vector<8x1xf32>
    %c0_17 = arith.constant 0 : index
    %c0_18 = arith.constant 0 : index
    %25 = vector.load %arg8[%c0_17, %c0_18] : memref<8x1xf32, #tpu.memory_space<vmem>>, vector<8x1xf32>
    tpu.vector_store %arg8[%c0_17, %c0_18], %24 {strides = array<i32>} : memref<8x1xf32, #tpu.memory_space<vmem>>, vector<8x1xf32>,
    return
  }
  func.func @transform_0(%arg0: i32) -> (i32, i32) {
    %c0_i32 = arith.constant 0 : i32
    %c0_i32_0 = arith.constant 0 : i32
    return %arg0, %c0_i32 : i32, i32
  }
  func.func @transform_1(%arg0: i32) -> (i32, i32) {
    %c0_i32 = arith.constant 0 : i32
    %c0_i32_0 = arith.constant 0 : i32
    %c0_i32_1 = arith.constant 0 : i32
    return %c0_i32, %c0_i32_0 : i32, i32
  }
  func.func @transform_2(%arg0: i32) -> (i32, i32) {
    %c0_i32 = arith.constant 0 : i32
    %c0_i32_0 = arith.constant 0 : i32
    %c0_i32_1 = arith.constant 0 : i32
    return %c0_i32, %c0_i32_0 : i32, i32
  }
  func.func @transform_3(%arg0: i32) -> (i32, i32) {
    %c0_i32 = arith.constant 0 : i32
    %c0_i32_0 = arith.constant 0 : i32
    %c0_i32_1 = arith.constant 0 : i32
    return %c0_i32, %c0_i32_0 : i32, i32
  }
  func.func @transform_4(%arg0: i32) -> (i32, i32) {
    %c0_i32 = arith.constant 0 : i32
    %c0_i32_0 = arith.constant 0 : i32
    %c0_i32_1 = arith.constant 0 : i32
    return %c0_i32, %c0_i32_0 : i32, i32
  }
  func.func @transform_5(%arg0: i32) -> (i32, i32) {
    %c0_i32 = arith.constant 0 : i32
    %c0_i32_0 = arith.constant 0 : i32
    %c0_i32_1 = arith.constant 0 : i32
    return %c0_i32, %c0_i32_0 : i32, i32
  }
  func.func @transform_6(%arg0: i32) -> (i32, i32) {
    %c0_i32 = arith.constant 0 : i32
    %c0_i32_0 = arith.constant 0 : i32
    %c0_i32_1 = arith.constant 0 : i32
    return %c0_i32, %c0_i32_0 : i32, i32
  }
  func.func @transform_7(%arg0: i32) -> (i32, i32) {
    %c0_i32 = arith.constant 0 : i32
    %c0_i32_0 = arith.constant 0 : i32
    return %arg0, %c0_i32 : i32, i32
  }
}

</mosaic_0001>

<llo_original>
// kernel: value_network_forward.1
$region0: #{value_network_forward.1}
  #allocation0 [shape = 'u32[]', space=smem, size = 0x4, offset = 0x4, fixed_abs, tag = 'smem constant byte address 0x4 - core index']
  #allocation1 [shape = 'u32[144,128]{1,0:T(1,128)}', space=vmem, size = 0x12000, scoped, tag = 'internal scratch']
  #allocation2 [shape = 'f32[1,1]{1,0:T(1,128)S(1)}', space=vmem, size = 0x200, scoped, tag = 'scoped memory for value_network_forward.1']
  %s0 = inlined_call_operand.vmem [shape: f32[8,16], index: 0, kind: input, shape index: {}]
  %s1 = inlined_call_operand.vmem [shape: bf16[16,256], index: 1, kind: input, shape index: {}]
  %s2 = inlined_call_operand.vmem [shape: f32[1,256], index: 2, kind: input, shape index: {}]
  %s3 = inlined_call_operand.vmem [shape: bf16[256,256], index: 3, kind: input, shape index: {}]
  %s4 = inlined_call_operand.vmem [shape: f32[1,256], index: 4, kind: input, shape index: {}]
  %s5 = inlined_call_operand.vmem [shape: f32[1,256], index: 5, kind: input, shape index: {}]
  %s6 = inlined_call_operand.<no memory space> [shape: f32[1,1], index: 6, kind: input, shape index: {}]
  %s7 = inlined_call_operand.vmem [shape: f32[8,1], index: 7, kind: output, shape index: {}]
  %s8 = sld [smem:[#allocation0]]
  $region38: #{value_network_forward.1} parent=0
    _
  %s10 = ssub.s32 1, %s8
  %s11 = scalar_select 0, %s10, %s8
  %v12 = vstv %s6
  %13 = vst [vmem:[#allocation2] sm:$0x1] %v12
  // Predicated region
  $region2: #{value_network_forward.1} parent=0 // pred_check
    _
  $region3: #{value_network_forward.1} parent=0 // pred_check_branch
    %15 = sbr.rel (0) target = $region5
  $region4: #{value_network_forward.1} parent=0 // pred_region
    _
  $region5: #{value_network_forward.1} parent=0 // pred_fallthru
    _
  // Predicated region
  $region6: #{value_network_forward.1} parent=0 // pred_check
    _
  $region7: #{value_network_forward.1} parent=0 // pred_check_branch
    %17 = sbr.rel (0) target = $region9
  $region8: #{value_network_forward.1} parent=0 // pred_region
    _
  $region9: #{value_network_forward.1} parent=0 // pred_fallthru
    _
  // Predicated region
  $region10: #{value_network_forward.1} parent=0 // pred_check
    _
  $region11: #{value_network_forward.1} parent=0 // pred_check_branch
    %19 = sbr.rel (0) target = $region13
  $region12: #{value_network_forward.1} parent=0 // pred_region
    _
  $region13: #{value_network_forward.1} parent=0 // pred_fallthru
    _
  // Predicated region
  $region14: #{value_network_forward.1} parent=0 // pred_check
    _
  $region15: #{value_network_forward.1} parent=0 // pred_check_branch
    %21 = sbr.rel (0) target = $region17
  $region16: #{value_network_forward.1} parent=0 // pred_region
    _
  $region17: #{value_network_forward.1} parent=0 // pred_fallthru
    _
  // Predicated region
  $region18: #{value_network_forward.1} parent=0 // pred_check
    _
  $region19: #{value_network_forward.1} parent=0 // pred_check_branch
    %23 = sbr.rel (0) target = $region21
  $region20: #{value_network_forward.1} parent=0 // pred_region
    _
  $region21: #{value_network_forward.1} parent=0 // pred_fallthru
    _
  // Predicated region
  $region22: #{value_network_forward.1} parent=0 // pred_check
    _
  $region23: #{value_network_forward.1} parent=0 // pred_check_branch
    %25 = sbr.rel (0) target = $region25
  $region24: #{value_network_forward.1} parent=0 // pred_region
    _
  $region25: #{value_network_forward.1} parent=0 // pred_fallthru
    _
  // Predicated region
  $region26: #{value_network_forward.1} parent=0 // pred_check
    _
  $region27: #{value_network_forward.1} parent=0 // pred_check_branch
    %27 = sbr.rel (0) target = $region29
  $region28: #{value_network_forward.1} parent=0 // pred_region
    _
  $region29: #{value_network_forward.1} parent=0 // pred_fallthru
    _
  %v29 = vld [vmem:[%s0] sm:$0xff]
  %v30 = vpack.c.bf16 %v29, %v29
  %v31 = vld [vmem:[%s1] sm:$0xff]
  %v32 = vld [vmem:[%s1 + $0x8] sm:$0xff]
  %v33 = vld [vmem:[%s2] sm:$0x3]
  %v35 = vlaneseq
  %v36 = vshrl.u32 %v35, 7
  %v37 = vsub.s32 0, %v36
  %v38 = vrot.slane %v33, %v37
  %v39 = vlaneseq
  %v40 = vshrl.u32 %v39, 7
  %v41 = vsub.s32 1, %v40
  %v42 = vrot.slane %v33, %v41
  %v47 = vunpack.c.l.b16 %v31
  %v48 = vunpack.c.h.b16 %v31
  %v49 = vunpack.c.l.b16 %v32
  %v50 = vunpack.c.h.b16 %v32
  %v51 = vpack.c.b16 %v49, %v47
  %v52 = vpack.c.b16 %v50, %v48
  %vm55 = vcmask 130048
  %v57 = vsel %vm55, %v30, 0
  %59 = vmatprep.subr.bf16.mxu0 0
  %60 = vmatpush1.bf16.msra.mxu0 0
  %61 = vmatprep.subr.bf16.mxu0 0
  %62 = vmatpush1.bf16.msra.mxu0 0
  %63 = vmatprep.subr.bf16.mxu0 0
  %64 = vmatpush1.bf16.msra.mxu0 0
  %65 = vmatprep.subr.bf16.mxu0 0
  %66 = vmatpush1.bf16.msra.mxu0 0
  %67 = vmatprep.subr.bf16.mxu0 0
  %68 = vmatpush1.bf16.msra.mxu0 0
  %69 = vmatprep.subr.bf16.mxu0 0
  %70 = vmatpush1.bf16.msra.mxu0 0
  %71 = vmatprep.subr.bf16.mxu0 0
  %72 = vmatpush1.bf16.msra.mxu0 0
  %73 = vmatprep.subr.bf16.mxu0 %v52
  %74 = vmatpush1.bf16.msra.mxu0 %v51
  %75 = vmatprep.subr.bf16.mxu0 0
  %76 = vmatpush2.bf16.msra.mxu0 0
  %77 = vmatprep.subr.bf16.mxu0 0
  %78 = vmatpush2.bf16.msra.mxu0 0
  %79 = vmatprep.subr.bf16.mxu0 0
  %80 = vmatpush2.bf16.msra.mxu0 0
  %81 = vmatprep.subr.bf16.mxu0 0
  %82 = vmatpush2.bf16.msra.mxu0 0
  %83 = vmatprep.subr.bf16.mxu0 0
  %84 = vmatpush2.bf16.msra.mxu0 0
  %85 = vmatprep.subr.bf16.mxu0 0
  %86 = vmatpush2.bf16.msra.mxu0 0
  %87 = vmatprep.subr.bf16.mxu0 0
  %88 = vmatpush2.bf16.msra.mxu0 0
  %89 = vmatprep.subr.bf16.mxu0 0
  %90 = vmatpush2.bf16.msra.mxu0 0
  %91 = vmatprep.mubr.bf16.mxu0 0
  %92 = vmatmul.mubr.bf16.gmra.mxu0 %v57
  %v93 = vpop.f32.mrf.mxu0
  %v94 = vadd.f32 %v38, %v93
  %v95 = vpop.f32.mrf.mxu0
  %v96 = vadd.f32 %v42, %v95
  %v97 = vpop.f32.mrf.mxu0
  %v98 = vpop.f32.mrf.mxu0
  %99 = vdwg.mxu0
  %v100 = vmax.f32 %v94, 0.0
  %v101 = vmax.f32 %v96, 0.0
  %v102 = vpack.c.bf16 %v100, %v100
  %v103 = vpack.c.bf16 %v101, %v101
  %v104 = vld [vmem:[%s3] sm:$0xff]
  %v105 = vld [vmem:[%s3 + $0x8] sm:$0xff]
  %v106 = vld [vmem:[%s3 + $0x10] sm:$0xff]
  %v107 = vld [vmem:[%s3 + $0x18] sm:$0xff]
  %v108 = vld [vmem:[%s3 + $0x20] sm:$0xff]
  %v109 = vld [vmem:[%s3 + $0x28] sm:$0xff]
  %v110 = vld [vmem:[%s3 + $0x30] sm:$0xff]
  %v111 = vld [vmem:[%s3 + $0x38] sm:$0xff]
  %v112 = vld [vmem:[%s3 + $0x40] sm:$0xff]
  %v113 = vld [vmem:[%s3 + $0x48] sm:$0xff]
  %v114 = vld [vmem:[%s3 + $0x50] sm:$0xff]
  %v115 = vld [vmem:[%s3 + $0x58] sm:$0xff]
  %v116 = vld [vmem:[%s3 + $0x60] sm:$0xff]
  %v117 = vld [vmem:[%s3 + $0x68] sm:$0xff]
  %v118 = vld [vmem:[%s3 + $0x70] sm:$0xff]
  %v119 = vld [vmem:[%s3 + $0x78] sm:$0xff]
  %v120 = vld [vmem:[%s3 + $0x80] sm:$0xff]
  %v121 = vld [vmem:[%s3 + $0x88] sm:$0xff]
  %v122 = vld [vmem:[%s3 + $0x90] sm:$0xff]
  %v123 = vld [vmem:[%s3 + $0x98] sm:$0xff]
  %v124 = vld [vmem:[%s3 + $0xa0] sm:$0xff]
  %v125 = vld [vmem:[%s3 + $0xa8] sm:$0xff]
  %v126 = vld [vmem:[%s3 + $0xb0] sm:$0xff]
  %v127 = vld [vmem:[%s3 + $0xb8] sm:$0xff]
  %v128 = vld [vmem:[%s3 + $0xc0] sm:$0xff]
  %v129 = vld [vmem:[%s3 + $0xc8] sm:$0xff]
  %v130 = vld [vmem:[%s3 + $0xd0] sm:$0xff]
  %v131 = vld [vmem:[%s3 + $0xd8] sm:$0xff]
  %v132 = vld [vmem:[%s3 + $0xe0] sm:$0xff]
  %v133 = vld [vmem:[%s3 + $0xe8] sm:$0xff]
  %v134 = vld [vmem:[%s3 + $0xf0] sm:$0xff]
  %v135 = vld [vmem:[%s3 + $0xf8] sm:$0xff]
  %v136 = vld [vmem:[%s4] sm:$0x3]
  %v138 = vlaneseq
  %v139 = vshrl.u32 %v138, 7
  %v140 = vsub.s32 0, %v139
  %v141 = vrot.slane %v136, %v140
  %v142 = vlaneseq
  %v143 = vshrl.u32 %v142, 7
  %v144 = vsub.s32 1, %v143
  %v145 = vrot.slane %v136, %v144
  %v180 = vunpack.c.l.b16 %v104
  %v181 = vunpack.c.h.b16 %v104
  %v182 = vunpack.c.l.b16 %v105
  %v183 = vunpack.c.h.b16 %v105
  %v184 = vunpack.c.l.b16 %v106
  %v185 = vunpack.c.h.b16 %v106
  %v186 = vunpack.c.l.b16 %v107
  %v187 = vunpack.c.h.b16 %v107
  %v188 = vunpack.c.l.b16 %v108
  %v189 = vunpack.c.h.b16 %v108
  %v190 = vunpack.c.l.b16 %v109
  %v191 = vunpack.c.h.b16 %v109
  %v192 = vunpack.c.l.b16 %v110
  %v193 = vunpack.c.h.b16 %v110
  %v194 = vunpack.c.l.b16 %v111
  %v195 = vunpack.c.h.b16 %v111
  %v196 = vunpack.c.l.b16 %v112
  %v197 = vunpack.c.h.b16 %v112
  %v198 = vunpack.c.l.b16 %v113
  %v199 = vunpack.c.h.b16 %v113
  %v200 = vunpack.c.l.b16 %v114
  %v201 = vunpack.c.h.b16 %v114
  %v202 = vunpack.c.l.b16 %v115
  %v203 = vunpack.c.h.b16 %v115
  %v204 = vunpack.c.l.b16 %v116
  %v205 = vunpack.c.h.b16 %v116
  %v206 = vunpack.c.l.b16 %v117
  %v207 = vunpack.c.h.b16 %v117
  %v208 = vunpack.c.l.b16 %v118
  %v209 = vunpack.c.h.b16 %v118
  %v210 = vunpack.c.l.b16 %v119
  %v211 = vunpack.c.h.b16 %v119
  %v212 = vunpack.c.l.b16 %v120
  %v213 = vunpack.c.h.b16 %v120
  %v214 = vunpack.c.l.b16 %v121
  %v215 = vunpack.c.h.b16 %v121
  %v216 = vunpack.c.l.b16 %v122
  %v217 = vunpack.c.h.b16 %v122
  %v218 = vunpack.c.l.b16 %v123
  %v219 = vunpack.c.h.b16 %v123
  %v220 = vunpack.c.l.b16 %v124
  %v221 = vunpack.c.h.b16 %v124
  %v222 = vunpack.c.l.b16 %v125
  %v223 = vunpack.c.h.b16 %v125
  %v224 = vunpack.c.l.b16 %v126
  %v225 = vunpack.c.h.b16 %v126
  %v226 = vunpack.c.l.b16 %v127
  %v227 = vunpack.c.h.b16 %v127
  %v228 = vunpack.c.l.b16 %v128
  %v229 = vunpack.c.h.b16 %v128
  %v230 = vunpack.c.l.b16 %v129
  %v231 = vunpack.c.h.b16 %v129
  %v232 = vunpack.c.l.b16 %v130
  %v233 = vunpack.c.h.b16 %v130
  %v234 = vunpack.c.l.b16 %v131
  %v235 = vunpack.c.h.b16 %v131
  %v236 = vunpack.c.l.b16 %v132
  %v237 = vunpack.c.h.b16 %v132
  %v238 = vunpack.c.l.b16 %v133
  %v239 = vunpack.c.h.b16 %v133
  %v240 = vunpack.c.l.b16 %v134
  %v241 = vunpack.c.h.b16 %v134
  %v242 = vunpack.c.l.b16 %v135
  %v243 = vunpack.c.h.b16 %v135
  %v244 = vpack.c.b16 %v182, %v180
  %v245 = vpack.c.b16 %v183, %v181
  %v246 = vpack.c.b16 %v186, %v184
  %v247 = vpack.c.b16 %v187, %v185
  %v248 = vpack.c.b16 %v190, %v188
  %v249 = vpack.c.b16 %v191, %v189
  %v250 = vpack.c.b16 %v194, %v192
  %v251 = vpack.c.b16 %v195, %v193
  %v252 = vpack.c.b16 %v198, %v196
  %v253 = vpack.c.b16 %v199, %v197
  %v254 = vpack.c.b16 %v202, %v200
  %v255 = vpack.c.b16 %v203, %v201
  %v256 = vpack.c.b16 %v206, %v204
  %v257 = vpack.c.b16 %v207, %v205
  %v258 = vpack.c.b16 %v210, %v208
  %v259 = vpack.c.b16 %v211, %v209
  %v260 = vpack.c.b16 %v214, %v212
  %v261 = vpack.c.b16 %v215, %v213
  %v262 = vpack.c.b16 %v218, %v216
  %v263 = vpack.c.b16 %v219, %v217
  %v264 = vpack.c.b16 %v222, %v220
  %v265 = vpack.c.b16 %v223, %v221
  %v266 = vpack.c.b16 %v226, %v224
  %v267 = vpack.c.b16 %v227, %v225
  %v268 = vpack.c.b16 %v230, %v228
  %v269 = vpack.c.b16 %v231, %v229
  %v270 = vpack.c.b16 %v234, %v232
  %v271 = vpack.c.b16 %v235, %v233
  %v272 = vpack.c.b16 %v238, %v236
  %v273 = vpack.c.b16 %v239, %v237
  %v274 = vpack.c.b16 %v242, %v240
  %v275 = vpack.c.b16 %v243, %v241
  %308 = vmatprep.subr.bf16.mxu0 %v259
  %309 = vmatpush1.bf16.msra.mxu0 %v258
  %310 = vmatprep.subr.bf16.mxu0 %v257
  %311 = vmatpush1.bf16.msra.mxu0 %v256
  %312 = vmatprep.subr.bf16.mxu0 %v255
  %313 = vmatpush1.bf16.msra.mxu0 %v254
  %314 = vmatprep.subr.bf16.mxu0 %v253
  %315 = vmatpush1.bf16.msra.mxu0 %v252
  %316 = vmatprep.subr.bf16.mxu0 %v251
  %317 = vmatpush1.bf16.msra.mxu0 %v250
  %318 = vmatprep.subr.bf16.mxu0 %v249
  %319 = vmatpush1.bf16.msra.mxu0 %v248
  %320 = vmatprep.subr.bf16.mxu0 %v247
  %321 = vmatpush1.bf16.msra.mxu0 %v246
  %322 = vmatprep.subr.bf16.mxu0 %v245
  %323 = vmatpush1.bf16.msra.mxu0 %v244
  %324 = vmatprep.subr.bf16.mxu0 %v275
  %325 = vmatpush2.bf16.msra.mxu0 %v274
  %326 = vmatprep.subr.bf16.mxu0 %v273
  %327 = vmatpush2.bf16.msra.mxu0 %v272
  %328 = vmatprep.subr.bf16.mxu0 %v271
  %329 = vmatpush2.bf16.msra.mxu0 %v270
  %330 = vmatprep.subr.bf16.mxu0 %v269
  %331 = vmatpush2.bf16.msra.mxu0 %v268
  %332 = vmatprep.subr.bf16.mxu0 %v267
  %333 = vmatpush2.bf16.msra.mxu0 %v266
  %334 = vmatprep.subr.bf16.mxu0 %v265
  %335 = vmatpush2.bf16.msra.mxu0 %v264
  %336 = vmatprep.subr.bf16.mxu0 %v263
  %337 = vmatpush2.bf16.msra.mxu0 %v262
  %338 = vmatprep.subr.bf16.mxu0 %v261
  %339 = vmatpush2.bf16.msra.mxu0 %v260
  %340 = vmatprep.mubr.bf16.mxu0 %v103
  %341 = vmatmul.mubr.bf16.gmra.mxu0 %v102
  %v342 = vpop.f32.mrf.mxu0
  %v343 = vadd.f32 %v141, %v342
  %v344 = vpop.f32.mrf.mxu0
  %v345 = vadd.f32 %v145, %v344
  %v346 = vpop.f32.mrf.mxu0
  %v347 = vpop.f32.mrf.mxu0
  %348 = vdwg.mxu0
  %v349 = vmax.f32 %v343, 0.0
  %v350 = vmax.f32 %v345, 0.0
  %v351 = vld [vmem:[%s5] sm:$0x3]
  %v353 = vlaneseq
  %v354 = vshrl.u32 %v353, 7
  %v355 = vsub.s32 0, %v354
  %v356 = vrot.slane %v351, %v355
  %v357 = vlaneseq
  %v358 = vshrl.u32 %v357, 7
  %v359 = vsub.s32 1, %v358
  %v360 = vrot.slane %v351, %v359
  %v363 = vmul.f32 %v349, %v356
  %v364 = vmul.f32 %v350, %v360
  %v365 = vadd.f32 %v363, %v364
  %366 = vadd.xlane.f32.xlu0 %v365
  %v367 = vpop.xlane.xlu0 %366
  %v368 = vld [vmem:[#allocation2] sm:$0x1]
  %v370 = vlaneseq
  %v371 = vshrl.u32 %v370, 7
  %v372 = vsub.s32 0, %v371
  %v373 = vrot.slane %v368, %v372
  %v375 = vadd.f32 %v367, %v373
  %vm376 = vcmask 7168
  %377 = vst.msk [vmem:[%s7] sm:$0xff] %vm376, %v375
  // Predicated region
  $region30: #{value_network_forward.1} parent=0 // pred_check
    _
  $region31: #{value_network_forward.1} parent=0 // pred_check_branch
    %379 = sbr.rel (0) target = $region33
  $region32: #{value_network_forward.1} parent=0 // pred_region
    _
  $region33: #{value_network_forward.1} parent=0 // pred_fallthru
    _
  // Predicated region
  $region34: #{value_network_forward.1} parent=0 // pred_check
    _
  $region35: #{value_network_forward.1} parent=0 // pred_check_branch
    %381 = sbr.rel (0) target = $region37
  $region36: #{value_network_forward.1} parent=0 // pred_region
    _
  $region37: #{value_network_forward.1} parent=0 // pred_fallthru
    _

</llo_original>
